<compile_context>
chip_gen: v5e
topology: v5e:2x2
jax: 0.10.0
libtpu: 0.0.40
codegen_flags: <defaults>
</compile_context>

<pallas_src>
import functools

import jax
import jax.numpy as jnp
from jax.experimental import pallas as pl
from jax.experimental.pallas import tpu as pltpu


def _round_up(a, b):
    return ((a + b - 1) // b) * b


def _cdiv(a, b):
    return -(-a // b)


def _chip_info():
    """Best-effort (device_kind, tensorcores_per_chip, physical_vmem_bytes)."""
    kind = ""
    try:
        kind = jax.devices()[0].device_kind.lower()
    except Exception:
        pass
    vmem = None
    try:
        vmem = int(pltpu.get_tpu_info().vmem_capacity_bytes)
    except Exception:
        vmem = None
    if vmem is None or vmem <= 0:
        vmem = (64 if "v7" in kind else 128) * 1024 * 1024
    ntc = 2 if "v7" in kind else 1
    return kind, ntc, vmem


def _layernorm_kernel(x_ref, gamma_ref, beta_ref, o_ref, *, eps, n_feat, n_pad):
    x = x_ref[...].astype(jnp.float32)                       # (tile, F_pad)
    # Mean over the TRUE feature count (padded lanes are zero -> sum is exact).
    mean = jnp.sum(x, axis=-1, keepdims=True) * (1.0 / n_feat)
    diff = x - mean
    sq = jnp.sum(diff * diff, axis=-1, keepdims=True)
    if n_pad:
        # Each zero-padded lane holds -mean after the subtraction and contributes
        # exactly mean^2 to the raw sum; correct with one per-row scalar FMA
        # instead of a per-element mask.
        sq = sq - n_pad * (mean * mean)
    if n_feat > 1:
        var = sq * (1.0 / (n_feat - 1))      # torch .std(): unbiased (N-1)
    else:
        var = jnp.full_like(sq, jnp.nan)     # torch: unbiased std of 1 elem is NaN
    std = jnp.sqrt(var)
    # Per-row (tile,1) reciprocal — exact; off the per-element critical path.
    inv = pl.reciprocal(std + eps, approx=False)
    norm = diff * inv
    if gamma_ref.dtype != jnp.float32:
        norm = norm.astype(gamma_ref.dtype)  # bf16 affine on v6e/v7x when x is bf16
    y = gamma_ref[...] * norm + beta_ref[...]
    o_ref[...] = y.astype(o_ref.dtype)


def layer_norm(x, a_2, b_2, eps=1e-6):
    """x: (..., F) array; a_2, b_2: (F,) params. Returns array of same shape/dtype."""
    orig_shape = x.shape
    F = orig_shape[-1]
    rows = 1
    for d in orig_shape[:-1]:
        rows *= d
    rows = max(int(rows), 1)

    itemsize = jnp.dtype(x.dtype).itemsize
    sub = max(8, 32 // itemsize)            # sublane multiple: 8 f32, 16 bf16
    LANE = 128

    kind, ntc, phys_vmem = _chip_info()

    # ---- Layout prep: features padded to a 128 multiple ONLY when needed -----
    x2 = x.reshape(rows, F)
    if F % LANE == 0:
        F_pad = F
    else:
        F_pad = _round_up(F, LANE)
        x2 = jnp.pad(x2, ((0, 0), (0, F_pad - F)))

    # bf16-native VPU on v6e/v7x: do the final affine in bf16 for bf16 inputs.
    affine_dtype = jnp.float32
    if x.dtype == jnp.bfloat16 and ("v6" in kind or "v7" in kind):
        affine_dtype = jnp.bfloat16
    gamma = a_2.astype(affine_dtype).reshape(1, F)
    beta = b_2.astype(affine_dtype).reshape(1, F)
    if F_pad != F:
        gamma = jnp.pad(gamma, ((0, 0), (0, F_pad - F)))
        beta = jnp.pad(beta, ((0, 0), (0, F_pad - F)))

    # ---- Row-tile selection ---------------------------------------------------
    # Scoped VMEM: generous on 128 MiB chips (v5e/v6e), conservative on 64 MiB v7x.
    if phys_vmem >= 100 * 1024 * 1024:
        vmem_limit = 96 * 1024 * 1024
    else:
        vmem_limit = 32 * 1024 * 1024
    # Per-row VMEM bytes: double-buffered input block + double-buffered output
    # block + ~3 live f32 intermediates (upcast x, diff, norm) of compiler scratch.
    per_row = 4 * F_pad * itemsize + 3 * F_pad * 4
    budget = (3 * vmem_limit) // 4
    tile_vmem = max(sub, budget // per_row)
    # Byte target: ~4 MiB input blocks (roofline saturates well before that).
    tile_tgt = max(sub, (4 * 1024 * 1024) // (F_pad * itemsize))

    tile = min(tile_vmem, tile_tgt)
    tile = max(sub, (tile // sub) * sub)
    if tile > rows:
        tile = rows if rows < sub else _round_up(rows, sub)

    # v7x only: aim for an even number of grid steps so the 2 TCs split cleanly.
    if ntc >= 2 and rows > sub:
        nsteps = _cdiv(rows, tile)
        if nsteps % 2 == 1:
            cand = max(sub, _round_up(_cdiv(rows, nsteps + 1), sub))
            if _cdiv(rows, cand) % 2 == 0:
                tile = cand

    grid = (_cdiv(rows, tile),)             # ragged final block handled by Pallas

    kernel = functools.partial(
        _layernorm_kernel, eps=float(eps), n_feat=F, n_pad=F_pad - F
    )
    out2 = pl.pallas_call(
        kernel,
        out_shape=jax.ShapeDtypeStruct((rows, F_pad), x.dtype),
        grid_spec=pltpu.PrefetchScalarGridSpec(
            num_scalar_prefetch=0,
            grid=grid,
            in_specs=[
                pl.BlockSpec((tile, F_pad), lambda i: (i, 0)),
                pl.BlockSpec((1, F_pad), lambda i: (0, 0)),
                pl.BlockSpec((1, F_pad), lambda i: (0, 0)),
            ],
            out_specs=pl.BlockSpec((tile, F_pad), lambda i: (i, 0)),
        ),
        compiler_params=pltpu.CompilerParams(
            dimension_semantics=("parallel",),
            vmem_limit_bytes=vmem_limit,
        ),
    )(x2, gamma, beta)

    if F_pad != F:
        out2 = out2[:, :F]
    return out2.reshape(orig_shape)


if __name__ == "__main__":
    # Module __init__(features): a_2 = ones(features), b_2 = zeros(features).
    batch, seq, hidden = 2, 8, 32
    key = jax.random.PRNGKey(0)
    x = jax.random.normal(key, (batch, seq, hidden), dtype=jnp.float32)

    a_2 = jnp.ones((hidden,), dtype=jnp.float32)
    b_2 = jnp.zeros((hidden,), dtype=jnp.float32)
    eps = 1e-6

    out = layer_norm(x, a_2, b_2, eps)
    out = jax.block_until_ready(out)

    # Pure-JAX reference (matches torch semantics: unbiased std, eps added to std).
    mean = jnp.mean(x, axis=-1, keepdims=True)
    std = jnp.sqrt(jnp.sum((x - mean) ** 2, axis=-1, keepdims=True) / (hidden - 1))
    ref = a_2 * (x - mean) / (std + eps) + b_2

    assert out.shape == x.shape and out.dtype == x.dtype
    assert jnp.allclose(out, ref, atol=1e-5, rtol=1e-5), float(jnp.max(jnp.abs(out - ref)))
    print("KERNEL_OK")
</pallas_src>

<mosaic_0001>
module attributes {stable_mosaic.version = 11 : i64} {
  func.func @_layernorm_kernel(%arg0: i32, %arg1: memref<16x128xf32, #tpu.memory_space<vmem>>, %arg2: memref<1x128xf32, #tpu.memory_space<vmem>>, %arg3: memref<1x128xf32, #tpu.memory_space<vmem>>, %arg4: memref<16x128xf32, #tpu.memory_space<vmem>>) attributes {dimension_semantics = [#tpu.dimension_semantics<parallel>], iteration_bounds = array<i64: 1>, scalar_prefetch = 0 : i64, scratch_operands = 0 : i64, tpu.core_type = #tpu.core_type<tc>, window_params = [{transform_indices = @transform_0, window_bounds = array<i64: 16, 128>}, {pipeline_mode = #tpu.pipeline_mode<synchronous>, transform_indices = @transform_1, window_bounds = array<i64: 1, 128>}, {pipeline_mode = #tpu.pipeline_mode<synchronous>, transform_indices = @transform_2, window_bounds = array<i64: 1, 128>}, {transform_indices = @transform_3, window_bounds = array<i64: 16, 128>}]} {
    %c0 = arith.constant 0 : index
    %c0_0 = arith.constant 0 : index
    %0 = vector.load %arg1[%c0, %c0_0] : memref<16x128xf32, #tpu.memory_space<vmem>>, vector<16x128xf32>
    %cst = arith.constant dense<0.000000e+00> : vector<16xf32>
    %1 = vector.multi_reduction <add>, %0, %cst [1] : vector<16x128xf32> to vector<16xf32>
    %2 = vector.shape_cast %1 : vector<16xf32> to vector<16x1xf32>
    %cst_1 = arith.constant 3.125000e-02 : f32
    %3 = vector.broadcast %cst_1 : f32 to vector<16x1xf32>
    %4 = arith.mulf %2, %3 : vector<16x1xf32>
    %5 = vector.broadcast %4 : vector<16x1xf32> to vector<16x128xf32>
    %6 = arith.subf %0, %5 : vector<16x128xf32>
    %7 = arith.mulf %6, %6 : vector<16x128xf32>
    %cst_2 = arith.constant dense<0.000000e+00> : vector<16xf32>
    %8 = vector.multi_reduction <add>, %7, %cst_2 [1] : vector<16x128xf32> to vector<16xf32>
    %9 = vector.shape_cast %8 : vector<16xf32> to vector<16x1xf32>
    %10 = arith.mulf %4, %4 : vector<16x1xf32>
    %cst_3 = arith.constant 9.600000e+01 : f32
    %11 = vector.broadcast %cst_3 : f32 to vector<16x1xf32>
    %12 = arith.mulf %11, %10 : vector<16x1xf32>
    %13 = arith.subf %9, %12 : vector<16x1xf32>
    %cst_4 = arith.constant 0.0322580636 : f32
    %14 = vector.broadcast %cst_4 : f32 to vector<16x1xf32>
    %15 = arith.mulf %13, %14 : vector<16x1xf32>
    %16 = math.sqrt %15 : vector<16x1xf32>
    %cst_5 = arith.constant 9.99999997E-7 : f32
    %17 = vector.broadcast %cst_5 : f32 to vector<16x1xf32>
    %18 = arith.addf %16, %17 : vector<16x1xf32>
    %19 = tpu.reciprocal %18 : vector<16x1xf32> -> vector<16x1xf32>
    %20 = vector.broadcast %19 : vector<16x1xf32> to vector<16x128xf32>
    %21 = arith.mulf %6, %20 : vector<16x128xf32>
    %c0_6 = arith.constant 0 : index
    %c0_7 = arith.constant 0 : index
    %22 = vector.load %arg2[%c0_6, %c0_7] : memref<1x128xf32, #tpu.memory_space<vmem>>, vector<1x128xf32>
    %23 = vector.broadcast %22 : vector<1x128xf32> to vector<16x128xf32>
    %24 = arith.mulf %23, %21 : vector<16x128xf32>
    %c0_8 = arith.constant 0 : index
    %c0_9 = arith.constant 0 : index
    %25 = vector.load %arg3[%c0_8, %c0_9] : memref<1x128xf32, #tpu.memory_space<vmem>>, vector<1x128xf32>
    %26 = vector.broadcast %25 : vector<1x128xf32> to vector<16x128xf32>
    %27 = arith.addf %24, %26 : vector<16x128xf32>
    %c0_10 = arith.constant 0 : index
    %c0_11 = arith.constant 0 : index
    %28 = vector.load %arg4[%c0_10, %c0_11] : memref<16x128xf32, #tpu.memory_space<vmem>>, vector<16x128xf32>
    tpu.vector_store %arg4[%c0_10, %c0_11], %27 {strides = array<i32>} : memref<16x128xf32, #tpu.memory_space<vmem>>, vector<16x128xf32>,
    return
  }
  func.func @transform_0(%arg0: i32) -> (i32, i32) {
    %c0_i32 = arith.constant 0 : i32
    %c0_i32_0 = arith.constant 0 : i32
    return %arg0, %c0_i32 : i32, i32
  }
  func.func @transform_1(%arg0: i32) -> (i32, i32) {
    %c0_i32 = arith.constant 0 : i32
    %c0_i32_0 = arith.constant 0 : i32
    %c0_i32_1 = arith.constant 0 : i32
    return %c0_i32, %c0_i32_0 : i32, i32
  }
  func.func @transform_2(%arg0: i32) -> (i32, i32) {
    %c0_i32 = arith.constant 0 : i32
    %c0_i32_0 = arith.constant 0 : i32
    %c0_i32_1 = arith.constant 0 : i32
    return %c0_i32, %c0_i32_0 : i32, i32
  }
  func.func @transform_3(%arg0: i32) -> (i32, i32) {
    %c0_i32 = arith.constant 0 : i32
    %c0_i32_0 = arith.constant 0 : i32
    return %arg0, %c0_i32 : i32, i32
  }
}

</mosaic_0001>

<llo_original>
// kernel: tpu_custom_call.1
$region0: #{tpu_custom_call.1}
  #allocation0 [shape = 'u32[]', space=smem, size = 0x4, offset = 0x4, fixed_abs, tag = 'smem constant byte address 0x4 - core index']
  #allocation1 [shape = 'u32[72,128]{1,0:T(1,128)}', space=vmem, size = 0x9000, scoped, tag = 'internal scratch']
  %s0 = inlined_call_operand.hbm [shape: f32[16,128], index: 0, kind: input, shape index: {}]
  %s1 = inlined_call_operand.hbm [shape: f32[1,128], index: 1, kind: input, shape index: {}]
  %s2 = inlined_call_operand.vmem [shape: f32[1,128], index: 2, kind: input, shape index: {}]
  %s3 = inlined_call_operand.hbm [shape: f32[16,128], index: 3, kind: output, shape index: {}]
  %s4 = sld [smem:[#allocation0]]
  $region30: #{tpu_custom_call.1} parent=0
    _
  %s6 = ssub.s32 1, %s4
  %s7 = scalar_select 0, %s6, %s4
  $region1: #{tpu_custom_call.1} parent=0
    #allocation2 [shape = 'u8[8192]{0}', space=vmem, size = 0x2000, scoped, tag = 'input window, operand 0, single buffered']
    #allocation3 [shape = 's32[1]{0}', space=sflag, size = 0x4, scoped, tag = 'scoped memory for tpu_custom_call.1']
    #allocation4 [shape = 's32[1]{0}', space=sflag, size = 0x4, scoped, tag = 'scoped memory for tpu_custom_call.1']
    #allocation5 [shape = 'u8[512]{0}', space=vmem, size = 0x400, scoped, tag = 'input window, operand 1, single buffered']
    #allocation6 [shape = 's32[1]{0}', space=sflag, size = 0x4, scoped, tag = 'scoped memory for tpu_custom_call.1']
    #allocation7 [shape = 'u8[8192]{0}', space=vmem, size = 0x2000, scoped, tag = 'output window, operand 0, single buffered']
    %8 = vsyncpa [#allocation3], 0
    %9 = vsyncpa [#allocation6], 0
    %10 = vsyncpa [#allocation4], 0
    // Predicated region
    $region2: #{tpu_custom_call.1} parent=1 // pred_check
      _
    $region3: #{tpu_custom_call.1} parent=1 // pred_check_branch
      %12 = sbr.rel (0) target = $region5
    $region4: #{tpu_custom_call.1} parent=1 // pred_region
      %14 = vsyncadd [#allocation3], 0
      %s15 = sshll.u32 %s0, 4
      %s16 = int_to_ptr.hbm [resolvable:$true] %s15
      %s17 = sshll.u32 [#allocation2], 4
      %s18 = int_to_ptr.vmem [resolvable:$true] %s17
      %23 = dma.hbm_to_vmem [thread:$0]  %s16, 256, %s18, [#allocation3], 128, 128, 8
    $region5: #{tpu_custom_call.1} parent=1 // pred_fallthru
      _
    // Predicated region
    $region6: #{tpu_custom_call.1} parent=1 // pred_check
      _
    $region7: #{tpu_custom_call.1} parent=1 // pred_check_branch
      %25 = sbr.rel (0) target = $region9
    $region8: #{tpu_custom_call.1} parent=1 // pred_region
      %27 = vsyncadd [#allocation6], 0
      %s29 = sshll.u32 %s1, 4
      %s30 = int_to_ptr.hbm [resolvable:$true] %s29
      %s31 = sshll.u32 [#allocation5], 4
      %s32 = int_to_ptr.vmem [resolvable:$true] %s31
      %34 = dma.hbm_to_vmem [thread:$0]  %s30, 16, %s32, [#allocation6]
    $region9: #{tpu_custom_call.1} parent=1 // pred_fallthru
      _
    // Predicated region
    $region10: #{tpu_custom_call.1} parent=1 // pred_check
      _
    $region11: #{tpu_custom_call.1} parent=1 // pred_check_branch
      %36 = sbr.rel (0) target = $region13
    $region12: #{tpu_custom_call.1} parent=1 // pred_region
      _
    $region13: #{tpu_custom_call.1} parent=1 // pred_fallthru
      _
    // Predicated region
    $region14: #{tpu_custom_call.1} parent=1 // pred_check
      _
    $region15: #{tpu_custom_call.1} parent=1 // pred_check_branch
      %38 = sbr.rel (0) target = $region17
    $region16: #{tpu_custom_call.1} parent=1 // pred_region
      %40 = dma.done [#allocation3], 256
    $region17: #{tpu_custom_call.1} parent=1 // pred_fallthru
      _
    // Predicated region
    $region18: #{tpu_custom_call.1} parent=1 // pred_check
      _
    $region19: #{tpu_custom_call.1} parent=1 // pred_check_branch
      %42 = sbr.rel (0) target = $region21
    $region20: #{tpu_custom_call.1} parent=1 // pred_region
      %44 = dma.done [#allocation6], 16
    $region21: #{tpu_custom_call.1} parent=1 // pred_fallthru
      _
    %v45 = vld [vmem:[#allocation2] sm:$0xff]
    %v46 = vld [vmem:[#allocation2 + $0x8] sm:$0xff]
    %47 = vadd.xlane.f32.xlu0 %v45
    %v48 = vpop.xlane.xlu0 %47
    %49 = vadd.xlane.f32.xlu0 %v46
    %v50 = vpop.xlane.xlu0 %49
    %v51 = vmul.f32 %v48, 0.03125
    %v52 = vmul.f32 %v50, 0.03125
    %v53 = vsub.f32 %v45, %v51
    %v54 = vsub.f32 %v46, %v52
    %v55 = vmul.f32 %v53, %v53
    %v56 = vmul.f32 %v54, %v54
    %57 = vadd.xlane.f32.xlu0 %v55
    %v58 = vpop.xlane.xlu0 %57
    %59 = vadd.xlane.f32.xlu0 %v56
    %v60 = vpop.xlane.xlu0 %59
    %v61 = vmul.f32 %v51, %v51
    %v62 = vmul.f32 %v52, %v52
    %v63 = vmul.f32 %v61, 96.0
    %v64 = vmul.f32 %v62, 96.0
    %v65 = vsub.f32 %v58, %v63
    %v66 = vsub.f32 %v60, %v64
    %v67 = vmul.f32 %v65, 0.032258064
    %v68 = vmul.f32 %v66, 0.032258064
    %v69 = vrsqrt.pop %v67
    %v70 = vmul.f32 %v69, %v67
    %v71 = vmul.f32 %v70, %v69
    %v72 = vmul.f32 0.5, %v71
    %v73 = vsub.f32 1.5, %v72
    %v74 = vmul.f32 %v69, %v73
    %v75 = vmul.f32 %v67, %v74
    %vm76 = vcmp.eq.f32.partialorder %v67, inf
    %v77 = vsel %vm76, %v67, %v75
    %vm78 = vcmp.eq.f32.partialorder %v67, 0.0
    %v79 = vand.u32 %v67, 2147483648
    %v80 = vsel %vm78, %v79, %v77
    %v81 = vrsqrt.pop %v68
    %v82 = vmul.f32 %v81, %v68
    %v83 = vmul.f32 %v82, %v81
    %v84 = vmul.f32 0.5, %v83
    %v85 = vsub.f32 1.5, %v84
    %v86 = vmul.f32 %v81, %v85
    %v87 = vmul.f32 %v68, %v86
    %vm88 = vcmp.eq.f32.partialorder %v68, inf
    %v89 = vsel %vm88, %v68, %v87
    %vm90 = vcmp.eq.f32.partialorder %v68, 0.0
    %v91 = vand.u32 %v68, 2147483648
    %v92 = vsel %vm90, %v91, %v89
    %v93 = vadd.f32 %v80, 1e-06
    %v94 = vadd.f32 %v92, 1e-06
    %v95 = vrcp.pop %v93
    %v96 = vmul.f32 %v93, %v95
    %v97 = vsub.f32 1.0, %v96
    %v98 = vmul.f32 %v95, %v97
    %v99 = vadd.f32 %v95, %v98
    %vm100 = vweird.f32 %v93
    %vm101 = vweird.f32 %v95
    %vm102 = vmor %vm100, %vm101
    %v103 = vsel %vm102, %v95, %v99
    %v104 = vand.u32 2147483647, %v93
    %vm105 = vcmp.eq.f32.partialorder %v104, 8.507059e+37
    %v106 = vand.u32 %v93, 2147483648
    %v107 = vor.u32 1.1754944e-38, %v106
    %v108 = vsel %vm105, %v107, %v103
    %v109 = vrcp.pop %v94
    %v110 = vmul.f32 %v94, %v109
    %v111 = vsub.f32 1.0, %v110
    %v112 = vmul.f32 %v109, %v111
    %v113 = vadd.f32 %v109, %v112
    %vm114 = vweird.f32 %v94
    %vm115 = vweird.f32 %v109
    %vm116 = vmor %vm114, %vm115
    %v117 = vsel %vm116, %v109, %v113
    %v118 = vand.u32 2147483647, %v94
    %vm119 = vcmp.eq.f32.partialorder %v118, 8.507059e+37
    %v120 = vand.u32 %v94, 2147483648
    %v121 = vor.u32 1.1754944e-38, %v120
    %v122 = vsel %vm119, %v121, %v117
    %v123 = vmul.f32 %v53, %v108
    %v124 = vmul.f32 %v54, %v122
    %v125 = vld [vmem:[#allocation5] sm:$0x1]
    %v127 = vperm.slane %v125, 0
    %v129 = vmul.f32 %v127, %v123
    %v130 = vmul.f32 %v127, %v124
    %v131 = vld [vmem:[%s2] sm:$0x1]
    %v133 = vperm.slane %v131, 0
    %v135 = vadd.f32 %v129, %v133
    %v136 = vadd.f32 %v130, %v133
    %137 = vst [vmem:[#allocation7] sm:$0xff] %v135
    %138 = vst [vmem:[#allocation7 + $0x8] sm:$0xff] %v136
    // Predicated region
    $region22: #{tpu_custom_call.1} parent=1 // pred_check
      _
    $region23: #{tpu_custom_call.1} parent=1 // pred_check_branch
      %140 = sbr.rel (0) target = $region25
    $region24: #{tpu_custom_call.1} parent=1 // pred_region
      %142 = vsyncadd [#allocation4], 0
      %s143 = sshll.u32 [#allocation7], 4
      %s144 = int_to_ptr.vmem [resolvable:$true] %s143
      %s145 = sshll.u32 %s3, 4
      %s146 = int_to_ptr.hbm [resolvable:$true] %s145
      %151 = dma.vmem_to_hbm [thread:$0]  %s144, 256, %s146, [#allocation4], 128, 128, 8
    $region25: #{tpu_custom_call.1} parent=1 // pred_fallthru
      _
    // Predicated region
    $region26: #{tpu_custom_call.1} parent=1 // pred_check
      _
    $region27: #{tpu_custom_call.1} parent=1 // pred_check_branch
      %153 = sbr.rel (0) target = $region29
    $region28: #{tpu_custom_call.1} parent=1 // pred_region
      %155 = dma.done [#allocation4], 256
    $region29: #{tpu_custom_call.1} parent=1 // pred_fallthru
      _
    %156 = vsyncpa [#allocation3], 1
    %157 = vsyncpa [#allocation6], 1
    %158 = vsyncpa [#allocation4], 1

</llo_original>
